<compile_context>
chip_gen: v5e
topology: v5e:2x2
jax: 0.10.0
libtpu: 0.0.40
codegen_flags: <defaults>
</compile_context>

<pallas_src>
import jax
import jax.numpy as jnp
from jax.experimental import pallas as pl
from jax.experimental.pallas import tpu as pltpu

HIDDEN = 768         # hidden_size
Z_SIZE = 512         # self.z_size
A_SIZE = 256         # self.a_size
NUM_CLASSES = 3


# --------------------------------------------------------------------------
# Tile pickers (keep blocks (8,128)-friendly and evenly dividing).
# --------------------------------------------------------------------------
def _pick_row_tile(n, target=512):
    """Largest multiple-of-128 divisor of n that is <= target, else n (full)."""
    if n <= target:
        return n
    for cand in range(min(target, n), 127, -1):
        if n % cand == 0 and cand % 128 == 0:
            return cand
    return n


def _pick_batch_tile(b, target=256):
    if b <= target:
        return b
    for cand in range(min(target, b), 7, -1):
        if b % cand == 0 and cand % 8 == 0:
            return cand
    return b


# --------------------------------------------------------------------------
# Kernel 1: default forward path (dtype=None)
#   reshape_sequence: z = seq[:, 0, 256:]; seq[:, 0] = fc(z)
#   logits = qa_outputs(seq)   -> (B, S, 2)
#
# Folded form computed per row tile (rows = flattened B*S):
#   logits_row     = row @ qa_w + qa_b
#   tok0_logits    = row[256:] @ (fc_w @ qa_w) + (fc_b @ qa_w + qa_b)
#   out[row]       = tok0_logits if row is a CLS (token-0) row else logits_row
# --------------------------------------------------------------------------
def _qa_logits_kernel(mask_ref, x_ref, qaw_ref, qab_ref, fw_ref, fb_ref, out_ref):
    x = x_ref[...]                                              # (TM, H)
    logits = jnp.dot(x, qaw_ref[...],
                     preferred_element_type=jnp.float32) + qab_ref[...]   # (TM, 2)
    z = x[:, A_SIZE:]                                           # (TM, 512)
    tok0 = jnp.dot(z, fw_ref[...],
                   preferred_element_type=jnp.float32) + fb_ref[...]      # (TM, 2)
    is_cls = mask_ref[...] != 0                                 # (TM, 1) bool
    out_ref[...] = jnp.where(is_cls, tok0, logits)


def qa_forward(sequence_output, params, *, row_tile=512):
    """dtype=None branch: returns (start_logits, end_logits), each (B, S)."""
    B, S, H = sequence_output.shape
    assert H == HIDDEN
    N = B * S
    tile_m = _pick_row_tile(N, row_tile)
    dt = sequence_output.dtype

    x = sequence_output.reshape(N, H)                           # contiguous, free
    qa_w, qa_b = params["qa_w"], params["qa_b"]                 # (H,2), (1,2)
    fc_w, fc_b = params["fc_w"], params["fc_b"]                 # (Z,H), (1,H)
    # Fold fc into qa for token-0 rows (tiny host-side matmuls, done in f32).
    fold_w = jnp.dot(fc_w, qa_w)                                # (Z, 2)
    fold_b = jnp.dot(fc_b, qa_w) + qa_b                         # (1, 2)
    # Per-row CLS mask, precomputed (avoids in-kernel integer mod).
    is_cls = ((jnp.arange(N, dtype=jnp.int32) % S) == 0)
    is_cls = is_cls.astype(jnp.int32).reshape(N, 1)

    logits = pl.pallas_call(
        _qa_logits_kernel,
        out_shape=jax.ShapeDtypeStruct((N, 2), jnp.float32),
        grid=(N // tile_m,),
        in_specs=[
            pl.BlockSpec((tile_m, 1), lambda i: (i, 0)),        # CLS row mask
            pl.BlockSpec((tile_m, H), lambda i: (i, 0)),        # activations
            pl.BlockSpec((H, 2), lambda i: (0, 0)),             # qa_w (resident)
            pl.BlockSpec((1, 2), lambda i: (0, 0)),             # qa_b
            pl.BlockSpec((Z_SIZE, 2), lambda i: (0, 0)),        # folded fc->qa
            pl.BlockSpec((1, 2), lambda i: (0, 0)),             # folded bias
        ],
        out_specs=pl.BlockSpec((tile_m, 2), lambda i: (i, 0)),
        compiler_params=pltpu.CompilerParams(
            dimension_semantics=("parallel",)),
    )(is_cls, x, qa_w.astype(dt), qa_b, fold_w.astype(dt), fold_b)

    logits = logits.reshape(B, S, 2)
    # split(1, dim=-1) + squeeze(-1)  (glue)
    return logits[:, :, 0], logits[:, :, 1]
    # NOTE: the PyTorch reference also mutates sequence_output[:, 0] in place;
    # the returned logits already reflect that mutation, the mutated tensor
    # itself is not re-emitted (not part of forward()'s return value).


# --------------------------------------------------------------------------
# Kernel 2: DomainDiscriminator forward (used by 'dis' and 'motivational')
#   NOTE: with num_layers=3 the reference forward only applies the first TWO
#   (Linear, ReLU, Dropout) blocks, then the final Linear + log_softmax.
#   Dropout is identity at eval time.
#   TODO(synk): training-mode dropout (p=0.1) not implemented (eval semantics).
# --------------------------------------------------------------------------
def _disc_kernel(x_ref, w0_ref, b0_ref, w1_ref, b1_ref, w2_ref, b2_ref, out_ref):
    x = x_ref[...]                                              # (TB, D)
    h = jnp.maximum(
        jnp.dot(x, w0_ref[...], preferred_element_type=jnp.float32)
        + b0_ref[...], 0.0)
    h = h.astype(x.dtype)
    h = jnp.maximum(
        jnp.dot(h, w1_ref[...], preferred_element_type=jnp.float32)
        + b1_ref[...], 0.0)
    h = h.astype(x.dtype)
    logits = jnp.dot(h, w2_ref[...],
                     preferred_element_type=jnp.float32) + b2_ref[...]    # (TB, C)
    # log_softmax over dim=1
    m = jnp.max(logits, axis=1, keepdims=True)
    shifted = logits - m
    lse = jnp.log(jnp.sum(jnp.exp(shifted), axis=1, keepdims=True))
    out_ref[...] = shifted - lse


def discriminator_forward(x, dparams, *, batch_tile=256):
    B, D = x.shape
    Hd = dparams["w0"].shape[1]
    C = dparams["w2"].shape[1]
    tile_b = _pick_batch_tile(B, batch_tile)
    dt = x.dtype
    return pl.pallas_call(
        _disc_kernel,
        out_shape=jax.ShapeDtypeStruct((B, C), jnp.float32),
        grid=(B // tile_b,),
        in_specs=[
            pl.BlockSpec((tile_b, D), lambda i: (i, 0)),
            pl.BlockSpec((D, Hd), lambda i: (0, 0)),            # resident weights
            pl.BlockSpec((1, Hd), lambda i: (0, 0)),
            pl.BlockSpec((Hd, Hd), lambda i: (0, 0)),
            pl.BlockSpec((1, Hd), lambda i: (0, 0)),
            pl.BlockSpec((Hd, C), lambda i: (0, 0)),
            pl.BlockSpec((1, C), lambda i: (0, 0)),
        ],
        out_specs=pl.BlockSpec((tile_b, C), lambda i: (i, 0)),
        compiler_params=pltpu.CompilerParams(
            dimension_semantics=("parallel",)),
    )(x, dparams["w0"].astype(dt), dparams["b0"],
      dparams["w1"].astype(dt), dparams["b1"],
      dparams["w2"].astype(dt), dparams["b2"])


# --------------------------------------------------------------------------
# Top-level forward dispatcher (mirrors DomainQAMotivational.forward)
# --------------------------------------------------------------------------
def domain_qa_motivational_forward(params, sequence_output, labels=None,
                                   dtype=None):
    if dtype is None:
        return qa_forward(sequence_output, params)
    # TODO(synk): the dtype=='qa' training-loss branch (KLDiv + CrossEntropy)
    #             is not implemented; only None / 'dis' / 'motivational'.
    cls_embedding = sequence_output[:, 0, :]                    # (B, 768) tiny slice
    if dtype == "dis":
        hidden = cls_embedding[:, A_SIZE:]                      # z: (B, 512)
        log_prob = discriminator_forward(hidden, params["disc"])
    elif dtype == "motivational":
        hidden = cls_embedding[:, :A_SIZE]                      # a: (B, 256)
        log_prob = discriminator_forward(hidden, params["motiv"])
    else:
        raise ValueError(dtype)
    # NLLLoss (mean over batch)  -- scalar glue reduction in plain JAX
    B = hidden.shape[0]
    loss = -jnp.mean(log_prob[jnp.arange(B), labels])
    return loss


# --------------------------------------------------------------------------
# Plain-JAX references (module semantics) for correctness checking.
# --------------------------------------------------------------------------
def _reference_qa(sequence_output, params):
    z = sequence_output[:, 0, A_SIZE:]
    z_new = jnp.dot(z, params["fc_w"]) + params["fc_b"]
    seq = sequence_output.at[:, 0, :].set(z_new)
    logits = jnp.dot(seq, params["qa_w"]) + params["qa_b"]
    return logits[..., 0], logits[..., 1]


def _reference_disc_loss(x, dp, labels):
    h = jnp.maximum(jnp.dot(x, dp["w0"]) + dp["b0"], 0.0)
    h = jnp.maximum(jnp.dot(h, dp["w1"]) + dp["b1"], 0.0)
    logits = jnp.dot(h, dp["w2"]) + dp["b2"]
    log_prob = jax.nn.log_softmax(logits, axis=1)
    B = x.shape[0]
    return -jnp.mean(log_prob[jnp.arange(B), labels])


# --------------------------------------------------------------------------
# Deterministic parameter init (shapes follow the module's __init__).
# --------------------------------------------------------------------------
def _linear(key, fan_in, fan_out, std=0.02):
    w = jax.random.normal(key, (fan_in, fan_out), jnp.float32) * std
    b = jnp.zeros((1, fan_out), jnp.float32)
    return w, b


def _disc_params(key, input_size, hidden_size=HIDDEN, num_classes=NUM_CLASSES):
    k0, k1, k2 = jax.random.split(key, 3)
    # hidden_layers[2] (3rd ReLU block) exists in __init__ but is never used
    # in forward -> not allocated here.
    w0, b0 = _linear(k0, input_size, hidden_size)
    w1, b1 = _linear(k1, hidden_size, hidden_size)
    w2, b2 = _linear(k2, hidden_size, num_classes)
    return {"w0": w0, "b0": b0, "w1": w1, "b1": b1, "w2": w2, "b2": b2}


def init_params(key):
    k_qa, k_fc, k_dis, k_mot = jax.random.split(key, 4)
    qa_w, qa_b = _linear(k_qa, HIDDEN, 2)        # qa_outputs: Linear(768, 2)
    fc_w, fc_b = _linear(k_fc, Z_SIZE, HIDDEN)   # fc: Linear(512, 768)
    return {
        "qa_w": qa_w, "qa_b": qa_b,
        "fc_w": fc_w, "fc_b": fc_b,
        "disc": _disc_params(k_dis, Z_SIZE),     # discriminator: input 512
        "motiv": _disc_params(k_mot, A_SIZE),    # motivational: input 256
    }


if __name__ == "__main__":
    key = jax.random.PRNGKey(0)
    k_seq, k_params = jax.random.split(key)

    B, S = 2, 8
    sequence_output = jax.random.normal(k_seq, (B, S, HIDDEN), jnp.float32)
    params = init_params(k_params)
    labels = jnp.array([0, 2], dtype=jnp.int32)

    # default forward (dtype=None): start/end logits
    start_logits, end_logits = domain_qa_motivational_forward(
        params, sequence_output)
    jax.block_until_ready((start_logits, end_logits))
    assert start_logits.shape == (B, S) and end_logits.shape == (B, S)

    ref_start, ref_end = _reference_qa(sequence_output, params)
    assert jnp.allclose(start_logits, ref_start, atol=1e-3, rtol=1e-3)
    assert jnp.allclose(end_logits, ref_end, atol=1e-3, rtol=1e-3)

    # discriminator / motivational branches
    dis_loss = domain_qa_motivational_forward(
        params, sequence_output, labels=labels, dtype="dis")
    mot_loss = domain_qa_motivational_forward(
        params, sequence_output, labels=labels, dtype="motivational")
    jax.block_until_ready((dis_loss, mot_loss))
    assert dis_loss.shape == () and mot_loss.shape == ()

    cls = sequence_output[:, 0, :]
    ref_dis = _reference_disc_loss(cls[:, A_SIZE:], params["disc"], labels)
    ref_mot = _reference_disc_loss(cls[:, :A_SIZE], params["motiv"], labels)
    assert jnp.allclose(dis_loss, ref_dis, atol=1e-3, rtol=1e-3)
    assert jnp.allclose(mot_loss, ref_mot, atol=1e-3, rtol=1e-3)

    print("KERNEL_OK")
</pallas_src>

<mosaic_0001>
module attributes {stable_mosaic.version = 11 : i64} {
  func.func @_qa_logits_kernel(%arg0: i32, %arg1: memref<16x1xi32, #tpu.memory_space<vmem>>, %arg2: memref<16x768xf32, #tpu.memory_space<vmem>>, %arg3: memref<768x2xf32, #tpu.memory_space<vmem>>, %arg4: memref<1x2xf32, #tpu.memory_space<vmem>>, %arg5: memref<512x2xf32, #tpu.memory_space<vmem>>, %arg6: memref<1x2xf32, #tpu.memory_space<vmem>>, %arg7: memref<16x2xf32, #tpu.memory_space<vmem>>) attributes {dimension_semantics = [#tpu.dimension_semantics<parallel>], iteration_bounds = array<i64: 1>, scalar_prefetch = 0 : i64, scratch_operands = 0 : i64, tpu.core_type = #tpu.core_type<tc>, window_params = [{transform_indices = @transform_0, window_bounds = array<i64: 16, 1>}, {transform_indices = @transform_1, window_bounds = array<i64: 16, 768>}, {pipeline_mode = #tpu.pipeline_mode<synchronous>, transform_indices = @transform_2, window_bounds = array<i64: 768, 2>}, {pipeline_mode = #tpu.pipeline_mode<synchronous>, transform_indices = @transform_3, window_bounds = array<i64: 1, 2>}, {pipeline_mode = #tpu.pipeline_mode<synchronous>, transform_indices = @transform_4, window_bounds = array<i64: 512, 2>}, {pipeline_mode = #tpu.pipeline_mode<synchronous>, transform_indices = @transform_5, window_bounds = array<i64: 1, 2>}, {transform_indices = @transform_6, window_bounds = array<i64: 16, 2>}]} {
    %c0 = arith.constant 0 : index
    %c0_0 = arith.constant 0 : index
    %0 = vector.load %arg2[%c0, %c0_0] : memref<16x768xf32, #tpu.memory_space<vmem>>, vector<16x768xf32>
    %c0_1 = arith.constant 0 : index
    %c0_2 = arith.constant 0 : index
    %1 = vector.load %arg3[%c0_1, %c0_2] : memref<768x2xf32, #tpu.memory_space<vmem>>, vector<768x2xf32>
    %cst = arith.constant dense<0.000000e+00> : vector<16x2xf32>
    %2 = tpu.matmul %0, %1, %cst {dimension_numbers = #tpu.dot_dimension_numbers<[1], [0], [0], [1], [0, 0, 1, 1], [], []>} : vector<16x768xf32>, vector<768x2xf32>, vector<16x2xf32> -> vector<16x2xf32>
    %c0_3 = arith.constant 0 : index
    %c0_4 = arith.constant 0 : index
    %3 = vector.load %arg4[%c0_3, %c0_4] : memref<1x2xf32, #tpu.memory_space<vmem>>, vector<1x2xf32>
    %4 = vector.broadcast %3 : vector<1x2xf32> to vector<16x2xf32>
    %5 = arith.addf %2, %4 : vector<16x2xf32>
    %6 = vector.extract_strided_slice %0 {offsets = [0, 256], sizes = [16, 512], strides = [1, 1]} : vector<16x768xf32> to vector<16x512xf32>
    %c0_5 = arith.constant 0 : index
    %c0_6 = arith.constant 0 : index
    %7 = vector.load %arg5[%c0_5, %c0_6] : memref<512x2xf32, #tpu.memory_space<vmem>>, vector<512x2xf32>
    %cst_7 = arith.constant dense<0.000000e+00> : vector<16x2xf32>
    %8 = tpu.matmul %6, %7, %cst_7 {dimension_numbers = #tpu.dot_dimension_numbers<[1], [0], [0], [1], [0, 0, 1, 1], [], []>} : vector<16x512xf32>, vector<512x2xf32>, vector<16x2xf32> -> vector<16x2xf32>
    %c0_8 = arith.constant 0 : index
    %c0_9 = arith.constant 0 : index
    %9 = vector.load %arg6[%c0_8, %c0_9] : memref<1x2xf32, #tpu.memory_space<vmem>>, vector<1x2xf32>
    %10 = vector.broadcast %9 : vector<1x2xf32> to vector<16x2xf32>
    %11 = arith.addf %8, %10 : vector<16x2xf32>
    %c0_10 = arith.constant 0 : index
    %c0_11 = arith.constant 0 : index
    %12 = vector.load %arg1[%c0_10, %c0_11] : memref<16x1xi32, #tpu.memory_space<vmem>>, vector<16x1xi32>
    %c0_i32 = arith.constant 0 : i32
    %13 = vector.broadcast %c0_i32 : i32 to vector<16x1xi32>
    %14 = arith.cmpi ne, %12, %13 : vector<16x1xi32>
    %15 = vector.shape_cast %14 : vector<16x1xi1> to vector<16x1xi1>
    %16 = vector.broadcast %15 : vector<16x1xi1> to vector<16x2xi1>
    %17 = arith.select %16, %11, %5 : vector<16x2xi1>, vector<16x2xf32>
    %c0_12 = arith.constant 0 : index
    %c0_13 = arith.constant 0 : index
    %18 = vector.load %arg7[%c0_12, %c0_13] : memref<16x2xf32, #tpu.memory_space<vmem>>, vector<16x2xf32>
    tpu.vector_store %arg7[%c0_12, %c0_13], %17 {strides = array<i32>} : memref<16x2xf32, #tpu.memory_space<vmem>>, vector<16x2xf32>,
    return
  }
  func.func @transform_0(%arg0: i32) -> (i32, i32) {
    %c0_i32 = arith.constant 0 : i32
    %c0_i32_0 = arith.constant 0 : i32
    return %arg0, %c0_i32 : i32, i32
  }
  func.func @transform_1(%arg0: i32) -> (i32, i32) {
    %c0_i32 = arith.constant 0 : i32
    %c0_i32_0 = arith.constant 0 : i32
    return %arg0, %c0_i32 : i32, i32
  }
  func.func @transform_2(%arg0: i32) -> (i32, i32) {
    %c0_i32 = arith.constant 0 : i32
    %c0_i32_0 = arith.constant 0 : i32
    %c0_i32_1 = arith.constant 0 : i32
    return %c0_i32, %c0_i32_0 : i32, i32
  }
  func.func @transform_3(%arg0: i32) -> (i32, i32) {
    %c0_i32 = arith.constant 0 : i32
    %c0_i32_0 = arith.constant 0 : i32
    %c0_i32_1 = arith.constant 0 : i32
    return %c0_i32, %c0_i32_0 : i32, i32
  }
  func.func @transform_4(%arg0: i32) -> (i32, i32) {
    %c0_i32 = arith.constant 0 : i32
    %c0_i32_0 = arith.constant 0 : i32
    %c0_i32_1 = arith.constant 0 : i32
    return %c0_i32, %c0_i32_0 : i32, i32
  }
  func.func @transform_5(%arg0: i32) -> (i32, i32) {
    %c0_i32 = arith.constant 0 : i32
    %c0_i32_0 = arith.constant 0 : i32
    %c0_i32_1 = arith.constant 0 : i32
    return %c0_i32, %c0_i32_0 : i32, i32
  }
  func.func @transform_6(%arg0: i32) -> (i32, i32) {
    %c0_i32 = arith.constant 0 : i32
    %c0_i32_0 = arith.constant 0 : i32
    return %arg0, %c0_i32 : i32, i32
  }
}

</mosaic_0001>

<llo_original>
// kernel: tpu_custom_call.1
$region0: #{tpu_custom_call.1}
  #allocation0 [shape = 'u32[]', space=smem, size = 0x4, offset = 0x4, fixed_abs, tag = 'smem constant byte address 0x4 - core index']
  #allocation1 [shape = 'u32[72,128]{1,0:T(1,128)}', space=vmem, size = 0x9000, scoped, tag = 'internal scratch']
  %s0 = inlined_call_operand.vmem [shape: s32[16,1], index: 0, kind: input, shape index: {}]
  %s1 = inlined_call_operand.vmem [shape: f32[16,768], index: 1, kind: input, shape index: {}]
  %s2 = inlined_call_operand.vmem [shape: f32[768,2], index: 2, kind: input, shape index: {}]
  %s3 = inlined_call_operand.vmem [shape: f32[1,2], index: 3, kind: input, shape index: {}]
  %s4 = inlined_call_operand.vmem [shape: f32[512,2], index: 4, kind: input, shape index: {}]
  %s5 = inlined_call_operand.vmem [shape: f32[1,2], index: 5, kind: input, shape index: {}]
  %s6 = inlined_call_operand.vmem [shape: f32[16,2], index: 6, kind: output, shape index: {}]
  %s7 = sld [smem:[#allocation0]]
  $region34: #{tpu_custom_call.1} parent=0
    _
  %s9 = ssub.s32 1, %s7
  %s10 = scalar_select 0, %s9, %s7
  // Predicated region
  $region2: #{tpu_custom_call.1} parent=0 // pred_check
    _
  $region3: #{tpu_custom_call.1} parent=0 // pred_check_branch
    %12 = sbr.rel (0) target = $region5
  $region4: #{tpu_custom_call.1} parent=0 // pred_region
    _
  $region5: #{tpu_custom_call.1} parent=0 // pred_fallthru
    _
  // Predicated region
  $region6: #{tpu_custom_call.1} parent=0 // pred_check
    _
  $region7: #{tpu_custom_call.1} parent=0 // pred_check_branch
    %14 = sbr.rel (0) target = $region9
  $region8: #{tpu_custom_call.1} parent=0 // pred_region
    _
  $region9: #{tpu_custom_call.1} parent=0 // pred_fallthru
    _
  // Predicated region
  $region10: #{tpu_custom_call.1} parent=0 // pred_check
    _
  $region11: #{tpu_custom_call.1} parent=0 // pred_check_branch
    %16 = sbr.rel (0) target = $region13
  $region12: #{tpu_custom_call.1} parent=0 // pred_region
    _
  $region13: #{tpu_custom_call.1} parent=0 // pred_fallthru
    _
  // Predicated region
  $region14: #{tpu_custom_call.1} parent=0 // pred_check
    _
  $region15: #{tpu_custom_call.1} parent=0 // pred_check_branch
    %18 = sbr.rel (0) target = $region17
  $region16: #{tpu_custom_call.1} parent=0 // pred_region
    _
  $region17: #{tpu_custom_call.1} parent=0 // pred_fallthru
    _
  // Predicated region
  $region18: #{tpu_custom_call.1} parent=0 // pred_check
    _
  $region19: #{tpu_custom_call.1} parent=0 // pred_check_branch
    %20 = sbr.rel (0) target = $region21
  $region20: #{tpu_custom_call.1} parent=0 // pred_region
    _
  $region21: #{tpu_custom_call.1} parent=0 // pred_fallthru
    _
  // Predicated region
  $region22: #{tpu_custom_call.1} parent=0 // pred_check
    _
  $region23: #{tpu_custom_call.1} parent=0 // pred_check_branch
    %22 = sbr.rel (0) target = $region25
  $region24: #{tpu_custom_call.1} parent=0 // pred_region
    _
  $region25: #{tpu_custom_call.1} parent=0 // pred_fallthru
    _
  %v23 = vld [vmem:[%s1] sm:$0xff]
  %v24 = vld [vmem:[%s1 + $0x8] sm:$0xff]
  %v25 = vld [vmem:[%s1 + $0x10] sm:$0xff]
  %v26 = vld [vmem:[%s1 + $0x18] sm:$0xff]
  %v27 = vld [vmem:[%s1 + $0x20] sm:$0xff]
  %v28 = vld [vmem:[%s1 + $0x28] sm:$0xff]
  %v29 = vld [vmem:[%s1 + $0x30] sm:$0xff]
  %v30 = vld [vmem:[%s1 + $0x38] sm:$0xff]
  %v31 = vld [vmem:[%s1 + $0x40] sm:$0xff]
  %v32 = vld [vmem:[%s1 + $0x48] sm:$0xff]
  %v33 = vld [vmem:[%s1 + $0x50] sm:$0xff]
  %v34 = vld [vmem:[%s1 + $0x58] sm:$0xff]
  %v35 = vld [vmem:[%s2] sm:$0xff]
  %v36 = vld [vmem:[%s2 + $0x8] sm:$0xff]
  %v37 = vld [vmem:[%s2 + $0x10] sm:$0xff]
  %v38 = vld [vmem:[%s2 + $0x18] sm:$0xff]
  %v39 = vld [vmem:[%s2 + $0x20] sm:$0xff]
  %v40 = vld [vmem:[%s2 + $0x28] sm:$0xff]
  %v41 = vld [vmem:[%s2 + $0x30] sm:$0xff]
  %v42 = vld [vmem:[%s2 + $0x38] sm:$0xff]
  %v43 = vld [vmem:[%s2 + $0x40] sm:$0xff]
  %v44 = vld [vmem:[%s2 + $0x48] sm:$0xff]
  %v45 = vld [vmem:[%s2 + $0x50] sm:$0xff]
  %v46 = vld [vmem:[%s2 + $0x58] sm:$0xff]
  %v47 = vld [vmem:[%s2 + $0x60] sm:$0xff]
  %v48 = vld [vmem:[%s2 + $0x68] sm:$0xff]
  %v49 = vld [vmem:[%s2 + $0x70] sm:$0xff]
  %v50 = vld [vmem:[%s2 + $0x78] sm:$0xff]
  %v51 = vld [vmem:[%s2 + $0x80] sm:$0xff]
  %v52 = vld [vmem:[%s2 + $0x88] sm:$0xff]
  %v53 = vld [vmem:[%s2 + $0x90] sm:$0xff]
  %v54 = vld [vmem:[%s2 + $0x98] sm:$0xff]
  %v55 = vld [vmem:[%s2 + $0xa0] sm:$0xff]
  %v56 = vld [vmem:[%s2 + $0xa8] sm:$0xff]
  %v57 = vld [vmem:[%s2 + $0xb0] sm:$0xff]
  %v58 = vld [vmem:[%s2 + $0xb8] sm:$0xff]
  %v59 = vld [vmem:[%s2 + $0xc0] sm:$0xff]
  %v60 = vld [vmem:[%s2 + $0xc8] sm:$0xff]
  %v61 = vld [vmem:[%s2 + $0xd0] sm:$0xff]
  %v62 = vld [vmem:[%s2 + $0xd8] sm:$0xff]
  %v63 = vld [vmem:[%s2 + $0xe0] sm:$0xff]
  %v64 = vld [vmem:[%s2 + $0xe8] sm:$0xff]
  %v65 = vld [vmem:[%s2 + $0xf0] sm:$0xff]
  %v66 = vld [vmem:[%s2 + $0xf8] sm:$0xff]
  %v67 = vld [vmem:[%s2 + $0x100] sm:$0xff]
  %v68 = vld [vmem:[%s2 + $0x108] sm:$0xff]
  %v69 = vld [vmem:[%s2 + $0x110] sm:$0xff]
  %v70 = vld [vmem:[%s2 + $0x118] sm:$0xff]
  %v71 = vld [vmem:[%s2 + $0x120] sm:$0xff]
  %v72 = vld [vmem:[%s2 + $0x128] sm:$0xff]
  %v73 = vld [vmem:[%s2 + $0x130] sm:$0xff]
  %v74 = vld [vmem:[%s2 + $0x138] sm:$0xff]
  %v75 = vld [vmem:[%s2 + $0x140] sm:$0xff]
  %v76 = vld [vmem:[%s2 + $0x148] sm:$0xff]
  %v77 = vld [vmem:[%s2 + $0x150] sm:$0xff]
  %v78 = vld [vmem:[%s2 + $0x158] sm:$0xff]
  %v79 = vld [vmem:[%s2 + $0x160] sm:$0xff]
  %v80 = vld [vmem:[%s2 + $0x168] sm:$0xff]
  %v81 = vld [vmem:[%s2 + $0x170] sm:$0xff]
  %v82 = vld [vmem:[%s2 + $0x178] sm:$0xff]
  %v83 = vld [vmem:[%s2 + $0x180] sm:$0xff]
  %v84 = vld [vmem:[%s2 + $0x188] sm:$0xff]
  %v85 = vld [vmem:[%s2 + $0x190] sm:$0xff]
  %v86 = vld [vmem:[%s2 + $0x198] sm:$0xff]
  %v87 = vld [vmem:[%s2 + $0x1a0] sm:$0xff]
  %v88 = vld [vmem:[%s2 + $0x1a8] sm:$0xff]
  %v89 = vld [vmem:[%s2 + $0x1b0] sm:$0xff]
  %v90 = vld [vmem:[%s2 + $0x1b8] sm:$0xff]
  %v91 = vld [vmem:[%s2 + $0x1c0] sm:$0xff]
  %v92 = vld [vmem:[%s2 + $0x1c8] sm:$0xff]
  %v93 = vld [vmem:[%s2 + $0x1d0] sm:$0xff]
  %v94 = vld [vmem:[%s2 + $0x1d8] sm:$0xff]
  %v95 = vld [vmem:[%s2 + $0x1e0] sm:$0xff]
  %v96 = vld [vmem:[%s2 + $0x1e8] sm:$0xff]
  %v97 = vld [vmem:[%s2 + $0x1f0] sm:$0xff]
  %v98 = vld [vmem:[%s2 + $0x1f8] sm:$0xff]
  %v99 = vld [vmem:[%s2 + $0x200] sm:$0xff]
  %v100 = vld [vmem:[%s2 + $0x208] sm:$0xff]
  %v101 = vld [vmem:[%s2 + $0x210] sm:$0xff]
  %v102 = vld [vmem:[%s2 + $0x218] sm:$0xff]
  %v103 = vld [vmem:[%s2 + $0x220] sm:$0xff]
  %v104 = vld [vmem:[%s2 + $0x228] sm:$0xff]
  %v105 = vld [vmem:[%s2 + $0x230] sm:$0xff]
  %v106 = vld [vmem:[%s2 + $0x238] sm:$0xff]
  %v107 = vld [vmem:[%s2 + $0x240] sm:$0xff]
  %v108 = vld [vmem:[%s2 + $0x248] sm:$0xff]
  %v109 = vld [vmem:[%s2 + $0x250] sm:$0xff]
  %v110 = vld [vmem:[%s2 + $0x258] sm:$0xff]
  %v111 = vld [vmem:[%s2 + $0x260] sm:$0xff]
  %v112 = vld [vmem:[%s2 + $0x268] sm:$0xff]
  %v113 = vld [vmem:[%s2 + $0x270] sm:$0xff]
  %v114 = vld [vmem:[%s2 + $0x278] sm:$0xff]
  %v115 = vld [vmem:[%s2 + $0x280] sm:$0xff]
  %v116 = vld [vmem:[%s2 + $0x288] sm:$0xff]
  %v117 = vld [vmem:[%s2 + $0x290] sm:$0xff]
  %v118 = vld [vmem:[%s2 + $0x298] sm:$0xff]
  %v119 = vld [vmem:[%s2 + $0x2a0] sm:$0xff]
  %v120 = vld [vmem:[%s2 + $0x2a8] sm:$0xff]
  %v121 = vld [vmem:[%s2 + $0x2b0] sm:$0xff]
  %v122 = vld [vmem:[%s2 + $0x2b8] sm:$0xff]
  %v123 = vld [vmem:[%s2 + $0x2c0] sm:$0xff]
  %v124 = vld [vmem:[%s2 + $0x2c8] sm:$0xff]
  %v125 = vld [vmem:[%s2 + $0x2d0] sm:$0xff]
  %v126 = vld [vmem:[%s2 + $0x2d8] sm:$0xff]
  %v127 = vld [vmem:[%s2 + $0x2e0] sm:$0xff]
  %v128 = vld [vmem:[%s2 + $0x2e8] sm:$0xff]
  %v129 = vld [vmem:[%s2 + $0x2f0] sm:$0xff]
  %v130 = vld [vmem:[%s2 + $0x2f8] sm:$0xff]
  %v131 = vld [vmem:[%s3] sm:$0x1]
  %v133 = vperm.slane %v131, 0
  %135 = vmatpush.msra.mxu0 %v50
  %136 = vmatpush.msra.mxu0 %v49
  %137 = vmatpush.msra.mxu0 %v48
  %138 = vmatpush.msra.mxu0 %v47
  %139 = vmatpush.msra.mxu0 %v46
  %140 = vmatpush.msra.mxu0 %v45
  %141 = vmatpush.msra.mxu0 %v44
  %142 = vmatpush.msra.mxu0 %v43
  %143 = vmatpush.msra.mxu0 %v42
  %144 = vmatpush.msra.mxu0 %v41
  %145 = vmatpush.msra.mxu0 %v40
  %146 = vmatpush.msra.mxu0 %v39
  %147 = vmatpush.msra.mxu0 %v38
  %148 = vmatpush.msra.mxu0 %v37
  %149 = vmatpush.msra.mxu0 %v36
  %150 = vmatpush.msra.mxu0 %v35
  %151 = vmatmul.f32.gmra.mxu0 %v23
  %v152 = vpop.f32.mrf.mxu0
  %v153 = vadd.f32 %v133, %v152
  %154 = vmatmul.f32.gmra.mxu0 %v29
  %v155 = vpop.f32.mrf.mxu0
  %v156 = vadd.f32 %v133, %v155
  %157 = vdwg.mxu0
  %158 = vmatpush.msra.mxu0 %v66
  %159 = vmatpush.msra.mxu0 %v65
  %160 = vmatpush.msra.mxu0 %v64
  %161 = vmatpush.msra.mxu0 %v63
  %162 = vmatpush.msra.mxu0 %v62
  %163 = vmatpush.msra.mxu0 %v61
  %164 = vmatpush.msra.mxu0 %v60
  %165 = vmatpush.msra.mxu0 %v59
  %166 = vmatpush.msra.mxu0 %v58
  %167 = vmatpush.msra.mxu0 %v57
  %168 = vmatpush.msra.mxu0 %v56
  %169 = vmatpush.msra.mxu0 %v55
  %170 = vmatpush.msra.mxu0 %v54
  %171 = vmatpush.msra.mxu0 %v53
  %172 = vmatpush.msra.mxu0 %v52
  %173 = vmatpush.msra.mxu0 %v51
  %174 = vmatmul.f32.gmra.mxu0 %v24
  %v175 = vpop.f32.mrf.mxu0
  %v176 = vadd.f32 %v153, %v175
  %177 = vmatmul.f32.gmra.mxu0 %v30
  %v178 = vpop.f32.mrf.mxu0
  %v179 = vadd.f32 %v156, %v178
  %180 = vdwg.mxu0
  %181 = vmatpush.msra.mxu0 %v82
  %182 = vmatpush.msra.mxu0 %v81
  %183 = vmatpush.msra.mxu0 %v80
  %184 = vmatpush.msra.mxu0 %v79
  %185 = vmatpush.msra.mxu0 %v78
  %186 = vmatpush.msra.mxu0 %v77
  %187 = vmatpush.msra.mxu0 %v76
  %188 = vmatpush.msra.mxu0 %v75
  %189 = vmatpush.msra.mxu0 %v74
  %190 = vmatpush.msra.mxu0 %v73
  %191 = vmatpush.msra.mxu0 %v72
  %192 = vmatpush.msra.mxu0 %v71
  %193 = vmatpush.msra.mxu0 %v70
  %194 = vmatpush.msra.mxu0 %v69
  %195 = vmatpush.msra.mxu0 %v68
  %196 = vmatpush.msra.mxu0 %v67
  %197 = vmatmul.f32.gmra.mxu0 %v25
  %v198 = vpop.f32.mrf.mxu0
  %v199 = vadd.f32 %v176, %v198
  %200 = vmatmul.f32.gmra.mxu0 %v31
  %v201 = vpop.f32.mrf.mxu0
  %v202 = vadd.f32 %v179, %v201
  %203 = vdwg.mxu0
  %204 = vmatpush.msra.mxu0 %v98
  %205 = vmatpush.msra.mxu0 %v97
  %206 = vmatpush.msra.mxu0 %v96
  %207 = vmatpush.msra.mxu0 %v95
  %208 = vmatpush.msra.mxu0 %v94
  %209 = vmatpush.msra.mxu0 %v93
  %210 = vmatpush.msra.mxu0 %v92
  %211 = vmatpush.msra.mxu0 %v91
  %212 = vmatpush.msra.mxu0 %v90
  %213 = vmatpush.msra.mxu0 %v89
  %214 = vmatpush.msra.mxu0 %v88
  %215 = vmatpush.msra.mxu0 %v87
  %216 = vmatpush.msra.mxu0 %v86
  %217 = vmatpush.msra.mxu0 %v85
  %218 = vmatpush.msra.mxu0 %v84
  %219 = vmatpush.msra.mxu0 %v83
  %220 = vmatmul.f32.gmra.mxu0 %v26
  %v221 = vpop.f32.mrf.mxu0
  %v222 = vadd.f32 %v199, %v221
  %223 = vmatmul.f32.gmra.mxu0 %v32
  %v224 = vpop.f32.mrf.mxu0
  %v225 = vadd.f32 %v202, %v224
  %226 = vdwg.mxu0
  %227 = vmatpush.msra.mxu0 %v114
  %228 = vmatpush.msra.mxu0 %v113
  %229 = vmatpush.msra.mxu0 %v112
  %230 = vmatpush.msra.mxu0 %v111
  %231 = vmatpush.msra.mxu0 %v110
  %232 = vmatpush.msra.mxu0 %v109
  %233 = vmatpush.msra.mxu0 %v108
  %234 = vmatpush.msra.mxu0 %v107
  %235 = vmatpush.msra.mxu0 %v106
  %236 = vmatpush.msra.mxu0 %v105
  %237 = vmatpush.msra.mxu0 %v104
  %238 = vmatpush.msra.mxu0 %v103
  %239 = vmatpush.msra.mxu0 %v102
  %240 = vmatpush.msra.mxu0 %v101
  %241 = vmatpush.msra.mxu0 %v100
  %242 = vmatpush.msra.mxu0 %v99
  %243 = vmatmul.f32.gmra.mxu0 %v27
  %v244 = vpop.f32.mrf.mxu0
  %v245 = vadd.f32 %v222, %v244
  %246 = vmatmul.f32.gmra.mxu0 %v33
  %v247 = vpop.f32.mrf.mxu0
  %v248 = vadd.f32 %v225, %v247
  %249 = vdwg.mxu0
  %250 = vmatpush.msra.mxu0 %v130
  %251 = vmatpush.msra.mxu0 %v129
  %252 = vmatpush.msra.mxu0 %v128
  %253 = vmatpush.msra.mxu0 %v127
  %254 = vmatpush.msra.mxu0 %v126
  %255 = vmatpush.msra.mxu0 %v125
  %256 = vmatpush.msra.mxu0 %v124
  %257 = vmatpush.msra.mxu0 %v123
  %258 = vmatpush.msra.mxu0 %v122
  %259 = vmatpush.msra.mxu0 %v121
  %260 = vmatpush.msra.mxu0 %v120
  %261 = vmatpush.msra.mxu0 %v119
  %262 = vmatpush.msra.mxu0 %v118
  %263 = vmatpush.msra.mxu0 %v117
  %264 = vmatpush.msra.mxu0 %v116
  %265 = vmatpush.msra.mxu0 %v115
  %266 = vmatmul.f32.gmra.mxu0 %v28
  %v267 = vpop.f32.mrf.mxu0
  %v268 = vadd.f32 %v245, %v267
  %269 = vmatmul.f32.gmra.mxu0 %v34
  %v270 = vpop.f32.mrf.mxu0
  %v271 = vadd.f32 %v248, %v270
  %272 = vdwg.mxu0
  %v273 = vld [vmem:[%s4] sm:$0xff]
  %v274 = vld [vmem:[%s4 + $0x8] sm:$0xff]
  %v275 = vld [vmem:[%s4 + $0x10] sm:$0xff]
  %v276 = vld [vmem:[%s4 + $0x18] sm:$0xff]
  %v277 = vld [vmem:[%s4 + $0x20] sm:$0xff]
  %v278 = vld [vmem:[%s4 + $0x28] sm:$0xff]
  %v279 = vld [vmem:[%s4 + $0x30] sm:$0xff]
  %v280 = vld [vmem:[%s4 + $0x38] sm:$0xff]
  %v281 = vld [vmem:[%s4 + $0x40] sm:$0xff]
  %v282 = vld [vmem:[%s4 + $0x48] sm:$0xff]
  %v283 = vld [vmem:[%s4 + $0x50] sm:$0xff]
  %v284 = vld [vmem:[%s4 + $0x58] sm:$0xff]
  %v285 = vld [vmem:[%s4 + $0x60] sm:$0xff]
  %v286 = vld [vmem:[%s4 + $0x68] sm:$0xff]
  %v287 = vld [vmem:[%s4 + $0x70] sm:$0xff]
  %v288 = vld [vmem:[%s4 + $0x78] sm:$0xff]
  %v289 = vld [vmem:[%s4 + $0x80] sm:$0xff]
  %v290 = vld [vmem:[%s4 + $0x88] sm:$0xff]
  %v291 = vld [vmem:[%s4 + $0x90] sm:$0xff]
  %v292 = vld [vmem:[%s4 + $0x98] sm:$0xff]
  %v293 = vld [vmem:[%s4 + $0xa0] sm:$0xff]
  %v294 = vld [vmem:[%s4 + $0xa8] sm:$0xff]
  %v295 = vld [vmem:[%s4 + $0xb0] sm:$0xff]
  %v296 = vld [vmem:[%s4 + $0xb8] sm:$0xff]
  %v297 = vld [vmem:[%s4 + $0xc0] sm:$0xff]
  %v298 = vld [vmem:[%s4 + $0xc8] sm:$0xff]
  %v299 = vld [vmem:[%s4 + $0xd0] sm:$0xff]
  %v300 = vld [vmem:[%s4 + $0xd8] sm:$0xff]
  %v301 = vld [vmem:[%s4 + $0xe0] sm:$0xff]
  %v302 = vld [vmem:[%s4 + $0xe8] sm:$0xff]
  %v303 = vld [vmem:[%s4 + $0xf0] sm:$0xff]
  %v304 = vld [vmem:[%s4 + $0xf8] sm:$0xff]
  %v305 = vld [vmem:[%s4 + $0x100] sm:$0xff]
  %v306 = vld [vmem:[%s4 + $0x108] sm:$0xff]
  %v307 = vld [vmem:[%s4 + $0x110] sm:$0xff]
  %v308 = vld [vmem:[%s4 + $0x118] sm:$0xff]
  %v309 = vld [vmem:[%s4 + $0x120] sm:$0xff]
  %v310 = vld [vmem:[%s4 + $0x128] sm:$0xff]
  %v311 = vld [vmem:[%s4 + $0x130] sm:$0xff]
  %v312 = vld [vmem:[%s4 + $0x138] sm:$0xff]
  %v313 = vld [vmem:[%s4 + $0x140] sm:$0xff]
  %v314 = vld [vmem:[%s4 + $0x148] sm:$0xff]
  %v315 = vld [vmem:[%s4 + $0x150] sm:$0xff]
  %v316 = vld [vmem:[%s4 + $0x158] sm:$0xff]
  %v317 = vld [vmem:[%s4 + $0x160] sm:$0xff]
  %v318 = vld [vmem:[%s4 + $0x168] sm:$0xff]
  %v319 = vld [vmem:[%s4 + $0x170] sm:$0xff]
  %v320 = vld [vmem:[%s4 + $0x178] sm:$0xff]
  %v321 = vld [vmem:[%s4 + $0x180] sm:$0xff]
  %v322 = vld [vmem:[%s4 + $0x188] sm:$0xff]
  %v323 = vld [vmem:[%s4 + $0x190] sm:$0xff]
  %v324 = vld [vmem:[%s4 + $0x198] sm:$0xff]
  %v325 = vld [vmem:[%s4 + $0x1a0] sm:$0xff]
  %v326 = vld [vmem:[%s4 + $0x1a8] sm:$0xff]
  %v327 = vld [vmem:[%s4 + $0x1b0] sm:$0xff]
  %v328 = vld [vmem:[%s4 + $0x1b8] sm:$0xff]
  %v329 = vld [vmem:[%s4 + $0x1c0] sm:$0xff]
  %v330 = vld [vmem:[%s4 + $0x1c8] sm:$0xff]
  %v331 = vld [vmem:[%s4 + $0x1d0] sm:$0xff]
  %v332 = vld [vmem:[%s4 + $0x1d8] sm:$0xff]
  %v333 = vld [vmem:[%s4 + $0x1e0] sm:$0xff]
  %v334 = vld [vmem:[%s4 + $0x1e8] sm:$0xff]
  %v335 = vld [vmem:[%s4 + $0x1f0] sm:$0xff]
  %v336 = vld [vmem:[%s4 + $0x1f8] sm:$0xff]
  %v337 = vld [vmem:[%s5] sm:$0x1]
  %v339 = vperm.slane %v337, 0
  %341 = vmatpush.msra.mxu0 %v288
  %342 = vmatpush.msra.mxu0 %v287
  %343 = vmatpush.msra.mxu0 %v286
  %344 = vmatpush.msra.mxu0 %v285
  %345 = vmatpush.msra.mxu0 %v284
  %346 = vmatpush.msra.mxu0 %v283
  %347 = vmatpush.msra.mxu0 %v282
  %348 = vmatpush.msra.mxu0 %v281
  %349 = vmatpush.msra.mxu0 %v280
  %350 = vmatpush.msra.mxu0 %v279
  %351 = vmatpush.msra.mxu0 %v278
  %352 = vmatpush.msra.mxu0 %v277
  %353 = vmatpush.msra.mxu0 %v276
  %354 = vmatpush.msra.mxu0 %v275
  %355 = vmatpush.msra.mxu0 %v274
  %356 = vmatpush.msra.mxu0 %v273
  %357 = vmatmul.f32.gmra.mxu0 %v25
  %v358 = vpop.f32.mrf.mxu0
  %v359 = vadd.f32 %v339, %v358
  %360 = vmatmul.f32.gmra.mxu0 %v31
  %v361 = vpop.f32.mrf.mxu0
  %v362 = vadd.f32 %v339, %v361
  %363 = vdwg.mxu0
  %364 = vmatpush.msra.mxu0 %v304
  %365 = vmatpush.msra.mxu0 %v303
  %366 = vmatpush.msra.mxu0 %v302
  %367 = vmatpush.msra.mxu0 %v301
  %368 = vmatpush.msra.mxu0 %v300
  %369 = vmatpush.msra.mxu0 %v299
  %370 = vmatpush.msra.mxu0 %v298
  %371 = vmatpush.msra.mxu0 %v297
  %372 = vmatpush.msra.mxu0 %v296
  %373 = vmatpush.msra.mxu0 %v295
  %374 = vmatpush.msra.mxu0 %v294
  %375 = vmatpush.msra.mxu0 %v293
  %376 = vmatpush.msra.mxu0 %v292
  %377 = vmatpush.msra.mxu0 %v291
  %378 = vmatpush.msra.mxu0 %v290
  %379 = vmatpush.msra.mxu0 %v289
  %380 = vmatmul.f32.gmra.mxu0 %v26
  %v381 = vpop.f32.mrf.mxu0
  %v382 = vadd.f32 %v359, %v381
  %383 = vmatmul.f32.gmra.mxu0 %v32
  %v384 = vpop.f32.mrf.mxu0
  %v385 = vadd.f32 %v362, %v384
  %386 = vdwg.mxu0
  %387 = vmatpush.msra.mxu0 %v320
  %388 = vmatpush.msra.mxu0 %v319
  %389 = vmatpush.msra.mxu0 %v318
  %390 = vmatpush.msra.mxu0 %v317
  %391 = vmatpush.msra.mxu0 %v316
  %392 = vmatpush.msra.mxu0 %v315
  %393 = vmatpush.msra.mxu0 %v314
  %394 = vmatpush.msra.mxu0 %v313
  %395 = vmatpush.msra.mxu0 %v312
  %396 = vmatpush.msra.mxu0 %v311
  %397 = vmatpush.msra.mxu0 %v310
  %398 = vmatpush.msra.mxu0 %v309
  %399 = vmatpush.msra.mxu0 %v308
  %400 = vmatpush.msra.mxu0 %v307
  %401 = vmatpush.msra.mxu0 %v306
  %402 = vmatpush.msra.mxu0 %v305
  %403 = vmatmul.f32.gmra.mxu0 %v27
  %v404 = vpop.f32.mrf.mxu0
  %v405 = vadd.f32 %v382, %v404
  %406 = vmatmul.f32.gmra.mxu0 %v33
  %v407 = vpop.f32.mrf.mxu0
  %v408 = vadd.f32 %v385, %v407
  %409 = vdwg.mxu0
  %410 = vmatpush.msra.mxu0 %v336
  %411 = vmatpush.msra.mxu0 %v335
  %412 = vmatpush.msra.mxu0 %v334
  %413 = vmatpush.msra.mxu0 %v333
  %414 = vmatpush.msra.mxu0 %v332
  %415 = vmatpush.msra.mxu0 %v331
  %416 = vmatpush.msra.mxu0 %v330
  %417 = vmatpush.msra.mxu0 %v329
  %418 = vmatpush.msra.mxu0 %v328
  %419 = vmatpush.msra.mxu0 %v327
  %420 = vmatpush.msra.mxu0 %v326
  %421 = vmatpush.msra.mxu0 %v325
  %422 = vmatpush.msra.mxu0 %v324
  %423 = vmatpush.msra.mxu0 %v323
  %424 = vmatpush.msra.mxu0 %v322
  %425 = vmatpush.msra.mxu0 %v321
  %426 = vmatmul.f32.gmra.mxu0 %v28
  %v427 = vpop.f32.mrf.mxu0
  %v428 = vadd.f32 %v405, %v427
  %429 = vmatmul.f32.gmra.mxu0 %v34
  %v430 = vpop.f32.mrf.mxu0
  %v431 = vadd.f32 %v408, %v430
  %432 = vdwg.mxu0
  %v433 = vld [vmem:[%s0] sm:$0xff]
  %v434 = vld [vmem:[%s0 + $0x8] sm:$0xff]
  %vm435 = vcmp.ne.s32.totalorder %v433, 0
  %vm436 = vcmp.ne.s32.totalorder %v434, 0
  %v437 = vsel %vm435, 1, 0
  %v438 = vsel %vm436, 1, 0
  %439 = vset.pattern.permute.xlu0 0
  %440 = vperm.xlu0 %439, %v437
  %v441 = vpop.permute.xlu0 %440
  %442 = vset.pattern.permute.xlu0 0
  %443 = vperm.xlu0 %442, %v438
  %v444 = vpop.permute.xlu0 %443
  %vm445 = vcmp.eq.s32.totalorder %v441, 1
  %vm446 = vcmp.eq.s32.totalorder %v444, 1
  %v447 = vsel %vm445, %v428, %v268
  %v448 = vsel %vm446, %v431, %v271
  %vm449 = vcmask 15360
  %450 = vst.msk [vmem:[%s6] sm:$0xff] %vm449, %v447
  %451 = vst.msk [vmem:[%s6 + $0x8] sm:$0xff] %vm449, %v448
  // Predicated region
  $region26: #{tpu_custom_call.1} parent=0 // pred_check
    _
  $region27: #{tpu_custom_call.1} parent=0 // pred_check_branch
    %453 = sbr.rel (0) target = $region29
  $region28: #{tpu_custom_call.1} parent=0 // pred_region
    _
  $region29: #{tpu_custom_call.1} parent=0 // pred_fallthru
    _
  // Predicated region
  $region30: #{tpu_custom_call.1} parent=0 // pred_check
    _
  $region31: #{tpu_custom_call.1} parent=0 // pred_check_branch
    %455 = sbr.rel (0) target = $region33
  $region32: #{tpu_custom_call.1} parent=0 // pred_region
    _
  $region33: #{tpu_custom_call.1} parent=0 // pred_fallthru
    _

</llo_original>
